<compile_context>
chip_gen: v7x
topology: tpu7x:2x2x1
jax: 0.10.0
libtpu: 0.0.40
codegen_flags: <defaults>
</compile_context>

<pallas_src>
import math

import numpy as np
import jax
import jax.numpy as jnp
from jax.experimental import pallas as pl
from jax.experimental.pallas import tpu as pltpu


def _round_up(x, m):
    return ((x + m - 1) // m) * m


# ----------------------------------------------------------------------------
# FloatEncoder wavelength tables (identical math to the PyTorch module).
# ----------------------------------------------------------------------------
def float_encoder_terms(d_model, min_wavelength, max_wavelength):
    d_sin = math.ceil(d_model / 2)
    d_cos = d_model - d_sin
    base = min_wavelength / (2 * np.pi)
    scale = max_wavelength / min_wavelength
    sin_exp = np.arange(0, d_sin, dtype=np.float32) / (d_sin - 1)
    cos_exp = (np.arange(d_sin, d_model, dtype=np.float32) - d_sin) / (d_cos - 1)
    sin_term = (base * scale ** sin_exp).astype(np.float32)
    cos_term = (base * scale ** cos_exp).astype(np.float32)
    terms = np.concatenate([sin_term, cos_term]).astype(np.float32)      # (d,)
    sin_mask = np.concatenate(
        [np.ones(d_sin, np.float32), np.zeros(d_cos, np.float32)])       # (d,)
    # Kernel-friendly forms: reciprocal wavelengths + phase (sin -> 0, cos -> pi/2)
    inv_terms = (1.0 / terms).astype(np.float32)
    phase = ((1.0 - sin_mask) * (np.pi / 2.0)).astype(np.float32)
    return terms, sin_mask, inv_terms, phase


# ----------------------------------------------------------------------------
# Pallas kernel: one tile of TM flattened peak-rows -> (TM, D) embeddings.
# ----------------------------------------------------------------------------
def peak_embed_kernel(mz_ref, it_ref, rt_ref, invt_ref, phase_ref,
                      w1_ref, b1_ref, w2_ref, b2_ref, o_ref, feats_ref):
    D = o_ref.shape[1]
    cdt = feats_ref.dtype         # matmul operand dtype (bf16 on v5e/v6e/v7x)
    invt = invt_ref[...]          # (3, D)  reciprocal wavelengths (mz/int/rt)
    phase = phase_ref[...]        # (3, D)  0 for sin features, pi/2 for cos

    # Interleaved encode -> store: the f32 argument and sin are computed for
    # one input at a time and immediately written (as bf16) into the
    # contiguous feats scratch, so only one (TM, D) f32 intermediate is live.
    for r, v_ref in enumerate((mz_ref, it_ref, rt_ref)):
        arg = v_ref[...] * invt[r:r + 1, :] + phase[r:r + 1, :]   # f32 argument
        feats_ref[:, r * D:(r + 1) * D] = jnp.sin(arg).astype(cdt)

    # Fused first layer: a single (TM, 3D) @ (3D, D) MXU matmul with f32
    # accumulation (concat realised purely as contiguous scratch placement).
    h = jnp.dot(feats_ref[...], w1_ref[...], preferred_element_type=jnp.float32)
    h = jnp.maximum(h + b1_ref[...], 0.0)                         # bias + ReLU

    out = jnp.dot(h.astype(w2_ref.dtype), w2_ref[...],
                  preferred_element_type=jnp.float32) + b2_ref[...]
    o_ref[...] = out.astype(o_ref.dtype)


# ----------------------------------------------------------------------------
# Wrapper
# ----------------------------------------------------------------------------
def multi_scale_peak_embedding(x, rt, params, *, tile_rows=None,
                               use_bf16_matmul=True, out_dtype=jnp.float32):
    """x: (B, P, 2); rt: (B,) -> (B, P, d_model) in out_dtype (default f32)."""
    B, P, _ = x.shape
    d = params["w2"].shape[0]
    D = _round_up(d, 128)          # lane-dense output / full MXU N dimension
    N = B * P

    # ---- Row-tile heuristic: large tiles (512-1024) for real sizes, and an
    # ---- EVEN tile count >= 2 so v7x's two TensorCores split the grid evenly.
    if tile_rows is None:
        if N >= 4096:
            target = 1024
        elif N >= 1024:
            target = 512
        else:
            target = max(8, _round_up(-(-N // 2), 8))
    else:
        target = max(8, tile_rows)
    n_tiles = max(2, -(-N // target))
    if n_tiles % 2:
        n_tiles += 1
    TM = max(8, _round_up(-(-N // n_tiles), 8))
    N_pad = n_tiles * TM

    # ---- Inputs as flattened (N_pad, 1) columns (proven lane layout).
    xf = x.astype(jnp.float32)
    mz = xf[:, :, 0].reshape(N, 1)
    it = xf[:, :, 1].reshape(N, 1)
    rt_rows = jnp.broadcast_to(
        rt.astype(jnp.float32)[:, None], (B, P)).reshape(N, 1)
    if N_pad != N:
        pad = ((0, N_pad - N), (0, 0))
        mz = jnp.pad(mz, pad)
        it = jnp.pad(it, pad)
        rt_rows = jnp.pad(rt_rows, pad)

    # ---- Parameters, padded to D lanes if needed (padded features encode to
    # ---- sin(0)=0 and the padded weight rows/cols are zero -> exact result).
    wdt = jnp.bfloat16 if use_bf16_matmul else jnp.float32
    if D == d:
        inv_terms = params["inv_terms"]
        phase = params["phase"]
        w1 = params["w1"].astype(wdt)
        b1 = params["b1"]
        w2 = params["w2"].astype(wdt)
        b2 = params["b2"]
    else:
        pd = D - d
        inv_terms = jnp.pad(params["inv_terms"], ((0, 0), (0, pd)))
        phase = jnp.pad(params["phase"], ((0, 0), (0, pd)))
        w1 = jnp.zeros((3 * D, D), jnp.float32)
        for r in range(3):
            w1 = w1.at[r * D:r * D + d, :d].set(
                params["w1"][r * d:(r + 1) * d, :])
        w1 = w1.astype(wdt)
        b1 = jnp.pad(params["b1"], ((0, 0), (0, pd)))
        w2 = jnp.pad(params["w2"], ((0, pd), (0, pd))).astype(wdt)
        b2 = jnp.pad(params["b2"], ((0, 0), (0, pd)))

    out = pl.pallas_call(
        peak_embed_kernel,
        out_shape=jax.ShapeDtypeStruct((N_pad, D), out_dtype),
        grid=(n_tiles,),
        in_specs=[
            pl.BlockSpec((TM, 1), lambda i: (i, 0)),       # m/z rows
            pl.BlockSpec((TM, 1), lambda i: (i, 0)),       # intensity rows
            pl.BlockSpec((TM, 1), lambda i: (i, 0)),       # rt per row
            pl.BlockSpec((3, D), lambda i: (0, 0)),        # 1/wavelength terms
            pl.BlockSpec((3, D), lambda i: (0, 0)),        # sin/cos phase
            pl.BlockSpec((3 * D, D), lambda i: (0, 0)),    # W1
            pl.BlockSpec((1, D), lambda i: (0, 0)),        # b1
            pl.BlockSpec((D, D), lambda i: (0, 0)),        # W2
            pl.BlockSpec((1, D), lambda i: (0, 0)),        # b2
        ],
        out_specs=pl.BlockSpec((TM, D), lambda i: (i, 0)),
        scratch_shapes=[pltpu.VMEM((TM, 3 * D), wdt)],     # interleaved concat
        compiler_params=pltpu.CompilerParams(
            dimension_semantics=("parallel",)),
    )(mz, it, rt_rows, inv_terms, phase, w1, b1, w2, b2)

    return out[:N, :d].reshape(B, P, d)


# ----------------------------------------------------------------------------
# Pure-JAX reference (mirrors the PyTorch forward exactly, all f32).
# ----------------------------------------------------------------------------
def reference(x, rt, params):
    terms = params["terms"]    # (3, d)
    mask = params["mask"]      # (3, d)

    def enc(v, row):           # v: (..., 1) -> (..., d)
        arg = v / terms[row]
        return mask[row] * jnp.sin(arg) + (1.0 - mask[row]) * jnp.cos(arg)

    xf = x.astype(jnp.float32)
    mzs = enc(xf[:, :, 0:1], 0)                               # (B, P, d)
    ints = enc(xf[:, :, 1:2], 1)                              # (B, P, d)
    rts = enc(rt.astype(jnp.float32)[:, None, None], 2)       # (B, 1, d)
    rts = jnp.broadcast_to(rts, mzs.shape)                    # (B, P, d)
    feats = jnp.concatenate([mzs, ints, rts], axis=-1)        # (B, P, 3d)

    h = jnp.maximum(
        jnp.dot(feats, params["w1"], preferred_element_type=jnp.float32)
        + params["b1"], 0.0)
    return (jnp.dot(h, params["w2"], preferred_element_type=jnp.float32)
            + params["b2"]).astype(jnp.float32)


# ----------------------------------------------------------------------------
# Main
# ----------------------------------------------------------------------------
if __name__ == "__main__":
    d_model = 128            # lane-dense output (multiple of 128)
    B, P = 2, 8

    # Wavelength tables for the three FloatEncoders (module defaults).
    mz_t, mz_m, mz_inv, mz_ph = float_encoder_terms(d_model, 0.001, 10000.0)
    it_t, it_m, it_inv, it_ph = float_encoder_terms(d_model, 1e-6, 1.0)
    rt_t, rt_m, rt_inv, rt_ph = float_encoder_terms(d_model, 1e-6, 10.0)

    key = jax.random.PRNGKey(0)
    k1, k2, k3, k4, kx, kr = jax.random.split(key, 6)
    lim1 = 1.0 / math.sqrt(3 * d_model)
    lim2 = 1.0 / math.sqrt(d_model)
    params = {
        "terms": jnp.asarray(np.stack([mz_t, it_t, rt_t])),        # (3, d)
        "mask": jnp.asarray(np.stack([mz_m, it_m, rt_m])),         # (3, d)
        "inv_terms": jnp.asarray(np.stack([mz_inv, it_inv, rt_inv])),
        "phase": jnp.asarray(np.stack([mz_ph, it_ph, rt_ph])),
        "w1": jax.random.uniform(k1, (3 * d_model, d_model), jnp.float32,
                                 -lim1, lim1),
        "b1": jax.random.uniform(k2, (1, d_model), jnp.float32, -lim1, lim1),
        "w2": jax.random.uniform(k3, (d_model, d_model), jnp.float32,
                                 -lim2, lim2),
        "b2": jax.random.uniform(k4, (1, d_model), jnp.float32, -lim2, lim2),
    }

    # Inputs: m/z in [0, 1); intensity / rt kept small so the sinusoid
    # arguments stay in a numerically well-conditioned f32 range for the check.
    mz_vals = jax.random.uniform(kx, (B, P), jnp.float32)
    int_vals = jax.random.uniform(kr, (B, P), jnp.float32) * 1e-3
    x = jnp.stack([mz_vals, int_vals], axis=-1)               # (B, P, 2)
    rt = jax.random.uniform(jax.random.fold_in(key, 7), (B,), jnp.float32) * 1e-3

    ref = jax.block_until_ready(reference(x, rt, params))

    # f32 output (module semantics).
    out = jax.block_until_ready(multi_scale_peak_embedding(x, rt, params))
    assert out.shape == (B, P, d_model)
    assert bool(jnp.all(jnp.isfinite(out)))
    assert np.allclose(np.asarray(out), np.asarray(ref), atol=3e-2, rtol=3e-2)

    # Optional bf16 output path (halves HBM writeback on v6e/v7x).
    out_bf16 = jax.block_until_ready(
        multi_scale_peak_embedding(x, rt, params, out_dtype=jnp.bfloat16))
    assert out_bf16.dtype == jnp.bfloat16
    assert np.allclose(np.asarray(out_bf16, dtype=np.float32),
                       np.asarray(ref), atol=6e-2, rtol=6e-2)

    print("KERNEL_OK")
</pallas_src>

<mosaic_0001>
module attributes {stable_mosaic.version = 11 : i64} {
  func.func @peak_embed_kernel(%arg0: i32, %arg1: memref<8x1xf32, #tpu.memory_space<vmem>>, %arg2: memref<8x1xf32, #tpu.memory_space<vmem>>, %arg3: memref<8x1xf32, #tpu.memory_space<vmem>>, %arg4: memref<3x128xf32, #tpu.memory_space<vmem>>, %arg5: memref<3x128xf32, #tpu.memory_space<vmem>>, %arg6: memref<384x128xbf16, #tpu.memory_space<vmem>>, %arg7: memref<1x128xf32, #tpu.memory_space<vmem>>, %arg8: memref<128x128xbf16, #tpu.memory_space<vmem>>, %arg9: memref<1x128xf32, #tpu.memory_space<vmem>>, %arg10: memref<8x128xf32, #tpu.memory_space<vmem>>, %arg11: memref<8x384xbf16, #tpu.memory_space<vmem>>) attributes {dimension_semantics = [#tpu.dimension_semantics<parallel>], iteration_bounds = array<i64: 2>, scalar_prefetch = 0 : i64, scratch_operands = 1 : i64, tpu.core_type = #tpu.core_type<tc>, window_params = [{transform_indices = @transform_0, window_bounds = array<i64: 8, 1>}, {transform_indices = @transform_1, window_bounds = array<i64: 8, 1>}, {transform_indices = @transform_2, window_bounds = array<i64: 8, 1>}, {pipeline_mode = #tpu.pipeline_mode<synchronous>, transform_indices = @transform_3, window_bounds = array<i64: 3, 128>}, {pipeline_mode = #tpu.pipeline_mode<synchronous>, transform_indices = @transform_4, window_bounds = array<i64: 3, 128>}, {pipeline_mode = #tpu.pipeline_mode<synchronous>, transform_indices = @transform_5, window_bounds = array<i64: 384, 128>}, {pipeline_mode = #tpu.pipeline_mode<synchronous>, transform_indices = @transform_6, window_bounds = array<i64: 1, 128>}, {pipeline_mode = #tpu.pipeline_mode<synchronous>, transform_indices = @transform_7, window_bounds = array<i64: 128, 128>}, {pipeline_mode = #tpu.pipeline_mode<synchronous>, transform_indices = @transform_8, window_bounds = array<i64: 1, 128>}, {transform_indices = @transform_9, window_bounds = array<i64: 8, 128>}]} {
    %c0 = arith.constant 0 : index
    %c0_0 = arith.constant 0 : index
    %0 = vector.load %arg4[%c0, %c0_0] : memref<3x128xf32, #tpu.memory_space<vmem>>, vector<3x128xf32>
    %c0_1 = arith.constant 0 : index
    %c0_2 = arith.constant 0 : index
    %1 = vector.load %arg5[%c0_1, %c0_2] : memref<3x128xf32, #tpu.memory_space<vmem>>, vector<3x128xf32>
    %c0_3 = arith.constant 0 : index
    %c0_4 = arith.constant 0 : index
    %2 = vector.load %arg1[%c0_3, %c0_4] : memref<8x1xf32, #tpu.memory_space<vmem>>, vector<8x1xf32>
    %3 = vector.extract_strided_slice %0 {offsets = [0, 0], sizes = [1, 128], strides = [1, 1]} : vector<3x128xf32> to vector<1x128xf32>
    %4 = vector.broadcast %2 : vector<8x1xf32> to vector<8x128xf32>
    %5 = vector.broadcast %3 : vector<1x128xf32> to vector<8x128xf32>
    %6 = arith.mulf %4, %5 : vector<8x128xf32>
    %7 = vector.extract_strided_slice %1 {offsets = [0, 0], sizes = [1, 128], strides = [1, 1]} : vector<3x128xf32> to vector<1x128xf32>
    %8 = vector.broadcast %7 : vector<1x128xf32> to vector<8x128xf32>
    %9 = arith.addf %6, %8 : vector<8x128xf32>
    %10 = math.sin %9 : vector<8x128xf32>
    %11 = arith.truncf %10 : vector<8x128xf32> to vector<8x128xbf16>
    %c0_5 = arith.constant 0 : index
    %c0_6 = arith.constant 0 : index
    %12 = vector.load %arg11[%c0_5, %c0_6] : memref<8x384xbf16, #tpu.memory_space<vmem>>, vector<8x128xbf16>
    tpu.vector_store %arg11[%c0_5, %c0_6], %11 {strides = array<i32>} : memref<8x384xbf16, #tpu.memory_space<vmem>>, vector<8x128xbf16>,
    %c0_7 = arith.constant 0 : index
    %c0_8 = arith.constant 0 : index
    %13 = vector.load %arg2[%c0_7, %c0_8] : memref<8x1xf32, #tpu.memory_space<vmem>>, vector<8x1xf32>
    %14 = vector.extract_strided_slice %0 {offsets = [1, 0], sizes = [1, 128], strides = [1, 1]} : vector<3x128xf32> to vector<1x128xf32>
    %15 = vector.broadcast %13 : vector<8x1xf32> to vector<8x128xf32>
    %16 = vector.broadcast %14 : vector<1x128xf32> to vector<8x128xf32>
    %17 = arith.mulf %15, %16 : vector<8x128xf32>
    %18 = vector.extract_strided_slice %1 {offsets = [1, 0], sizes = [1, 128], strides = [1, 1]} : vector<3x128xf32> to vector<1x128xf32>
    %19 = vector.broadcast %18 : vector<1x128xf32> to vector<8x128xf32>
    %20 = arith.addf %17, %19 : vector<8x128xf32>
    %21 = math.sin %20 : vector<8x128xf32>
    %22 = arith.truncf %21 : vector<8x128xf32> to vector<8x128xbf16>
    %c0_9 = arith.constant 0 : index
    %c128 = arith.constant 128 : index
    %23 = vector.load %arg11[%c0_9, %c128] : memref<8x384xbf16, #tpu.memory_space<vmem>>, vector<8x128xbf16>
    tpu.vector_store %arg11[%c0_9, %c128], %22 {strides = array<i32>} : memref<8x384xbf16, #tpu.memory_space<vmem>>, vector<8x128xbf16>,
    %c0_10 = arith.constant 0 : index
    %c0_11 = arith.constant 0 : index
    %24 = vector.load %arg3[%c0_10, %c0_11] : memref<8x1xf32, #tpu.memory_space<vmem>>, vector<8x1xf32>
    %25 = vector.extract_strided_slice %0 {offsets = [2, 0], sizes = [1, 128], strides = [1, 1]} : vector<3x128xf32> to vector<1x128xf32>
    %26 = vector.broadcast %24 : vector<8x1xf32> to vector<8x128xf32>
    %27 = vector.broadcast %25 : vector<1x128xf32> to vector<8x128xf32>
    %28 = arith.mulf %26, %27 : vector<8x128xf32>
    %29 = vector.extract_strided_slice %1 {offsets = [2, 0], sizes = [1, 128], strides = [1, 1]} : vector<3x128xf32> to vector<1x128xf32>
    %30 = vector.broadcast %29 : vector<1x128xf32> to vector<8x128xf32>
    %31 = arith.addf %28, %30 : vector<8x128xf32>
    %32 = math.sin %31 : vector<8x128xf32>
    %33 = arith.truncf %32 : vector<8x128xf32> to vector<8x128xbf16>
    %c0_12 = arith.constant 0 : index
    %c256 = arith.constant 256 : index
    %34 = vector.load %arg11[%c0_12, %c256] : memref<8x384xbf16, #tpu.memory_space<vmem>>, vector<8x128xbf16>
    tpu.vector_store %arg11[%c0_12, %c256], %33 {strides = array<i32>} : memref<8x384xbf16, #tpu.memory_space<vmem>>, vector<8x128xbf16>,
    %c0_13 = arith.constant 0 : index
    %c0_14 = arith.constant 0 : index
    %35 = vector.load %arg11[%c0_13, %c0_14] : memref<8x384xbf16, #tpu.memory_space<vmem>>, vector<8x384xbf16>
    %c0_15 = arith.constant 0 : index
    %c0_16 = arith.constant 0 : index
    %36 = vector.load %arg6[%c0_15, %c0_16] : memref<384x128xbf16, #tpu.memory_space<vmem>>, vector<384x128xbf16>
    %cst = arith.constant dense<0.000000e+00> : vector<8x128xf32>
    %37 = tpu.matmul %35, %36, %cst {dimension_numbers = #tpu.dot_dimension_numbers<[1], [0], [0], [1], [0, 0, 1, 1], [], []>} : vector<8x384xbf16>, vector<384x128xbf16>, vector<8x128xf32> -> vector<8x128xf32>
    %c0_17 = arith.constant 0 : index
    %c0_18 = arith.constant 0 : index
    %38 = vector.load %arg7[%c0_17, %c0_18] : memref<1x128xf32, #tpu.memory_space<vmem>>, vector<1x128xf32>
    %39 = vector.broadcast %38 : vector<1x128xf32> to vector<8x128xf32>
    %40 = arith.addf %37, %39 : vector<8x128xf32>
    %cst_19 = arith.constant 0.000000e+00 : f32
    %41 = vector.broadcast %cst_19 : f32 to vector<8x128xf32>
    %42 = arith.maximumf %40, %41 : vector<8x128xf32>
    %43 = arith.truncf %42 : vector<8x128xf32> to vector<8x128xbf16>
    %c0_20 = arith.constant 0 : index
    %c0_21 = arith.constant 0 : index
    %44 = vector.load %arg8[%c0_20, %c0_21] : memref<128x128xbf16, #tpu.memory_space<vmem>>, vector<128x128xbf16>
    %cst_22 = arith.constant dense<0.000000e+00> : vector<8x128xf32>
    %45 = tpu.matmul %43, %44, %cst_22 {dimension_numbers = #tpu.dot_dimension_numbers<[1], [0], [0], [1], [0, 0, 1, 1], [], []>} : vector<8x128xbf16>, vector<128x128xbf16>, vector<8x128xf32> -> vector<8x128xf32>
    %c0_23 = arith.constant 0 : index
    %c0_24 = arith.constant 0 : index
    %46 = vector.load %arg9[%c0_23, %c0_24] : memref<1x128xf32, #tpu.memory_space<vmem>>, vector<1x128xf32>
    %47 = vector.broadcast %46 : vector<1x128xf32> to vector<8x128xf32>
    %48 = arith.addf %45, %47 : vector<8x128xf32>
    %c0_25 = arith.constant 0 : index
    %c0_26 = arith.constant 0 : index
    %49 = vector.load %arg10[%c0_25, %c0_26] : memref<8x128xf32, #tpu.memory_space<vmem>>, vector<8x128xf32>
    tpu.vector_store %arg10[%c0_25, %c0_26], %48 {strides = array<i32>} : memref<8x128xf32, #tpu.memory_space<vmem>>, vector<8x128xf32>,
    return
  }
  func.func @transform_0(%arg0: i32) -> (i32, i32) {
    %c0_i32 = arith.constant 0 : i32
    %c0_i32_0 = arith.constant 0 : i32
    return %arg0, %c0_i32 : i32, i32
  }
  func.func @transform_1(%arg0: i32) -> (i32, i32) {
    %c0_i32 = arith.constant 0 : i32
    %c0_i32_0 = arith.constant 0 : i32
    return %arg0, %c0_i32 : i32, i32
  }
  func.func @transform_2(%arg0: i32) -> (i32, i32) {
    %c0_i32 = arith.constant 0 : i32
    %c0_i32_0 = arith.constant 0 : i32
    return %arg0, %c0_i32 : i32, i32
  }
  func.func @transform_3(%arg0: i32) -> (i32, i32) {
    %c0_i32 = arith.constant 0 : i32
    %c0_i32_0 = arith.constant 0 : i32
    %c0_i32_1 = arith.constant 0 : i32
    return %c0_i32, %c0_i32_0 : i32, i32
  }
  func.func @transform_4(%arg0: i32) -> (i32, i32) {
    %c0_i32 = arith.constant 0 : i32
    %c0_i32_0 = arith.constant 0 : i32
    %c0_i32_1 = arith.constant 0 : i32
    return %c0_i32, %c0_i32_0 : i32, i32
  }
  func.func @transform_5(%arg0: i32) -> (i32, i32) {
    %c0_i32 = arith.constant 0 : i32
    %c0_i32_0 = arith.constant 0 : i32
    %c0_i32_1 = arith.constant 0 : i32
    return %c0_i32, %c0_i32_0 : i32, i32
  }
  func.func @transform_6(%arg0: i32) -> (i32, i32) {
    %c0_i32 = arith.constant 0 : i32
    %c0_i32_0 = arith.constant 0 : i32
    %c0_i32_1 = arith.constant 0 : i32
    return %c0_i32, %c0_i32_0 : i32, i32
  }
  func.func @transform_7(%arg0: i32) -> (i32, i32) {
    %c0_i32 = arith.constant 0 : i32
    %c0_i32_0 = arith.constant 0 : i32
    %c0_i32_1 = arith.constant 0 : i32
    return %c0_i32, %c0_i32_0 : i32, i32
  }
  func.func @transform_8(%arg0: i32) -> (i32, i32) {
    %c0_i32 = arith.constant 0 : i32
    %c0_i32_0 = arith.constant 0 : i32
    %c0_i32_1 = arith.constant 0 : i32
    return %c0_i32, %c0_i32_0 : i32, i32
  }
  func.func @transform_9(%arg0: i32) -> (i32, i32) {
    %c0_i32 = arith.constant 0 : i32
    %c0_i32_0 = arith.constant 0 : i32
    return %arg0, %c0_i32 : i32, i32
  }
}

</mosaic_0001>

<llo_original>
// kernel: tpu_custom_call.1
$region0: #{tpu_custom_call.1}
  #allocation0 [shape = 'u32[]', space=smem, size = 0x4, offset = 0x4, fixed_abs, tag = 'smem constant byte address 0x4 - core index']
  #allocation1 [shape = 'u32[144,128]{1,0:T(1,128)}', space=vmem, size = 0x12000, scoped, tag = 'internal scratch']
  #allocation2 [shape = 'bf16[8,384]{1,0:T(8,128)(2,1)}', space=vmem, size = 0x1800, scoped, tag = 'scratch operand']
  %s0 = inlined_call_operand.vmem [shape: f32[16,1], index: 0, kind: input, shape index: {}]
  %s1 = inlined_call_operand.vmem [shape: f32[16,1], index: 1, kind: input, shape index: {}]
  %s2 = inlined_call_operand.vmem [shape: f32[16,1], index: 2, kind: input, shape index: {}]
  %s3 = inlined_call_operand.vmem [shape: f32[3,128], index: 3, kind: input, shape index: {}]
  %s4 = inlined_call_operand.vmem [shape: f32[3,128], index: 4, kind: input, shape index: {}]
  %s5 = inlined_call_operand.hbm [shape: bf16[384,128], index: 5, kind: input, shape index: {}]
  %s6 = inlined_call_operand.vmem [shape: f32[1,128], index: 6, kind: input, shape index: {}]
  %s7 = inlined_call_operand.vmem [shape: bf16[128,128], index: 7, kind: input, shape index: {}]
  %s8 = inlined_call_operand.vmem [shape: f32[1,128], index: 8, kind: input, shape index: {}]
  %s9 = inlined_call_operand.hbm [shape: f32[16,128], index: 9, kind: output, shape index: {}]
  %s10 = sld [smem:[#allocation0]]
  $region73: #{tpu_custom_call.1} parent=0
    _
  %s12 = ssub.s32 1, %s10
  %s13 = scalar_select 0, %s12, %s10
  $region1: #{tpu_custom_call.1} parent=0
    #allocation3 [shape = 'u8[98304]{0}', space=vmem, size = 0x18000, scoped, tag = 'input window, operand 5, single buffered']
    #allocation4 [shape = 's32[2]{0}', space=sflag, size = 0x8, scoped, tag = 'scoped memory for tpu_custom_call.1']
    #allocation5 [shape = 's32[2]{0}', space=sflag, size = 0x8, scoped, tag = 'scoped memory for tpu_custom_call.1']
    #allocation6 [shape = 'u8[8192]{0}', space=vmem, size = 0x2000, scoped, tag = 'output window, operand 0']
    %14 = vsyncpa [#allocation4], 0
    %15 = vsyncpa [#allocation5], 0
    %s16 = scalar_lea.sflag [#allocation5], 1
    %17 = vsyncpa %s16, 0
    loop: start=0, step=1, limit=4
    $region2: #{tpu_custom_call.1} parent=1 // loop_pre_header
      _
    $region3: #{tpu_custom_call.1} parent=1 // loop_header
      %s19 = sphi 0, %s23
      %p20 = scmp.ge.s32.totalorder %s19, 4
      %s29 = sphi 0, %s31
      %s32 = sphi 0, %s29
      %s33 = sphi 0, %s32
      %s49 = sphi 0, %s33
      %s55 = sphi 0, %s57
      %s58 = sphi 0, %s55
      %s59 = sphi 0, %s58
      %s75 = sphi 0, %s59
      %s81 = sphi 0, %s83
      %s84 = sphi 0, %s81
      %s85 = sphi 0, %s84
      %s101 = sphi 0, %s85
      %s105 = sphi 0, %s105
      %s107 = sphi 0, %s105
      %s108 = sphi 0, %s107
      %s122 = sphi 0, %s108
      %s126 = sphi 0, %s126
      %s128 = sphi 0, %s126
      %s129 = sphi 0, %s128
      %s143 = sphi 0, %s129
      %s147 = sphi 0, %s147
      %s149 = sphi 0, %s147
      %s150 = sphi 0, %s149
      %s164 = sphi 0, %s150
      %s168 = sphi 0, %s168
      %s170 = sphi 0, %s168
      %s171 = sphi 0, %s170
      %s185 = sphi 0, %s171
      %s189 = sphi 0, %s189
      %s191 = sphi 0, %s189
      %s192 = sphi 0, %s191
      %s206 = sphi 0, %s192
      %s210 = sphi 0, %s210
      %s212 = sphi 0, %s210
      %s213 = sphi 0, %s212
      %s227 = sphi 0, %s213
      %s233 = sphi 0, %s235
      %s236 = sphi 0, %s233
      %s237 = sphi 0, %s236
      %s253 = sphi 0, %s237
    $region4: #{tpu_custom_call.1} parent=1 // loop_header_branch
      %22 = sbr.rel (%p20) target = $region8
    $region5: #{tpu_custom_call.1} parent=1 // loop_body
      %s24 = ssub.s32 %s19, 1
      %s25 = ssub.s32 %s19, 2
      %s26 = sadd.s32 %s19, 1
      %s27 = ssub.s32 %s19, %s26
      %p28 = scmp.eq.s32.totalorder %s27, 0
      %s30 = sadd.s32 %s29, 1
      %s31 = scalar_select %p28, %s29, %s30
      %p34 = pneg %p28
      %p35 = scmp.eq.s32.totalorder %s19, 1
      %p36 = por %p34, %p35
      %p37 = scmp.ne.s32.totalorder %s29, %s32
      %p38 = scmp.eq.s32.totalorder %s19, 0
      %p39 = por %p37, %p38
      %p40 = scmp.ne.s32.totalorder %s29, %s32
      %p41 = scmp.eq.s32.totalorder %s24, 1
      %p42 = por %p40, %p41
      %p43 = scmp.ne.s32.totalorder %s32, %s33
      %p44 = scmp.eq.s32.totalorder %s24, 0
      %p45 = por %p43, %p44
      %p46 = scmp.ne.s32.totalorder %s32, %s33
      %p47 = scmp.eq.s32.totalorder %s25, 1
      %p48 = por %p46, %p47
      %p50 = scmp.ne.s32.totalorder %s33, %s49
      %p51 = scmp.eq.s32.totalorder %s25, 0
      %p52 = por %p50, %p51
      %s53 = ssub.s32 %s19, %s26
      %p54 = scmp.eq.s32.totalorder %s53, 0
      %s56 = sadd.s32 %s55, 1
      %s57 = scalar_select %p54, %s55, %s56
      %p60 = pneg %p54
      %p61 = scmp.eq.s32.totalorder %s19, 1
      %p62 = por %p60, %p61
      %p63 = scmp.ne.s32.totalorder %s55, %s58
      %p64 = scmp.eq.s32.totalorder %s19, 0
      %p65 = por %p63, %p64
      %p66 = scmp.ne.s32.totalorder %s55, %s58
      %p67 = scmp.eq.s32.totalorder %s24, 1
      %p68 = por %p66, %p67
      %p69 = scmp.ne.s32.totalorder %s58, %s59
      %p70 = scmp.eq.s32.totalorder %s24, 0
      %p71 = por %p69, %p70
      %p72 = scmp.ne.s32.totalorder %s58, %s59
      %p73 = scmp.eq.s32.totalorder %s25, 1
      %p74 = por %p72, %p73
      %p76 = scmp.ne.s32.totalorder %s59, %s75
      %p77 = scmp.eq.s32.totalorder %s25, 0
      %p78 = por %p76, %p77
      %s79 = ssub.s32 %s19, %s26
      %p80 = scmp.eq.s32.totalorder %s79, 0
      %s82 = sadd.s32 %s81, 1
      %s83 = scalar_select %p80, %s81, %s82
      %p86 = pneg %p80
      %p87 = scmp.eq.s32.totalorder %s19, 1
      %p88 = por %p86, %p87
      %p89 = scmp.ne.s32.totalorder %s81, %s84
      %p90 = scmp.eq.s32.totalorder %s19, 0
      %p91 = por %p89, %p90
      %p92 = scmp.ne.s32.totalorder %s81, %s84
      %p93 = scmp.eq.s32.totalorder %s24, 1
      %p94 = por %p92, %p93
      %p95 = scmp.ne.s32.totalorder %s84, %s85
      %p96 = scmp.eq.s32.totalorder %s24, 0
      %p97 = por %p95, %p96
      %p98 = scmp.ne.s32.totalorder %s84, %s85
      %p99 = scmp.eq.s32.totalorder %s25, 1
      %p100 = por %p98, %p99
      %p102 = scmp.ne.s32.totalorder %s85, %s101
      %p103 = scmp.eq.s32.totalorder %s25, 0
      %p104 = por %p102, %p103
      %s106 = sadd.s32 %s105, 1
      %p109 = scmp.eq.s32.totalorder %s19, 1
      %p110 = scmp.ne.s32.totalorder %s105, %s107
      %p111 = scmp.eq.s32.totalorder %s19, 0
      %p112 = por %p110, %p111
      %p113 = scmp.ne.s32.totalorder %s105, %s107
      %p114 = scmp.eq.s32.totalorder %s24, 1
      %p115 = por %p113, %p114
      %p116 = scmp.ne.s32.totalorder %s107, %s108
      %p117 = scmp.eq.s32.totalorder %s24, 0
      %p118 = por %p116, %p117
      %p119 = scmp.ne.s32.totalorder %s107, %s108
      %p120 = scmp.eq.s32.totalorder %s25, 1
      %p121 = por %p119, %p120
      %p123 = scmp.ne.s32.totalorder %s108, %s122
      %p124 = scmp.eq.s32.totalorder %s25, 0
      %p125 = por %p123, %p124
      %s127 = sadd.s32 %s126, 1
      %p130 = scmp.eq.s32.totalorder %s19, 1
      %p131 = scmp.ne.s32.totalorder %s126, %s128
      %p132 = scmp.eq.s32.totalorder %s19, 0
      %p133 = por %p131, %p132
      %p134 = scmp.ne.s32.totalorder %s126, %s128
      %p135 = scmp.eq.s32.totalorder %s24, 1
      %p136 = por %p134, %p135
      %p137 = scmp.ne.s32.totalorder %s128, %s129
      %p138 = scmp.eq.s32.totalorder %s24, 0
      %p139 = por %p137, %p138
      %p140 = scmp.ne.s32.totalorder %s128, %s129
      %p141 = scmp.eq.s32.totalorder %s25, 1
      %p142 = por %p140, %p141
      %p144 = scmp.ne.s32.totalorder %s129, %s143
      %p145 = scmp.eq.s32.totalorder %s25, 0
      %p146 = por %p144, %p145
      %s148 = sadd.s32 %s147, 1
      %p151 = scmp.eq.s32.totalorder %s19, 1
      %p152 = scmp.ne.s32.totalorder %s147, %s149
      %p153 = scmp.eq.s32.totalorder %s19, 0
      %p154 = por %p152, %p153
      %p155 = scmp.ne.s32.totalorder %s147, %s149
      %p156 = scmp.eq.s32.totalorder %s24, 1
      %p157 = por %p155, %p156
      %p158 = scmp.ne.s32.totalorder %s149, %s150
      %p159 = scmp.eq.s32.totalorder %s24, 0
      %p160 = por %p158, %p159
      %p161 = scmp.ne.s32.totalorder %s149, %s150
      %p162 = scmp.eq.s32.totalorder %s25, 1
      %p163 = por %p161, %p162
      %p165 = scmp.ne.s32.totalorder %s150, %s164
      %p166 = scmp.eq.s32.totalorder %s25, 0
      %p167 = por %p165, %p166
      %s169 = sadd.s32 %s168, 1
      %p172 = scmp.eq.s32.totalorder %s19, 1
      %p173 = scmp.ne.s32.totalorder %s168, %s170
      %p174 = scmp.eq.s32.totalorder %s19, 0
      %p175 = por %p173, %p174
      %p176 = scmp.ne.s32.totalorder %s168, %s170
      %p177 = scmp.eq.s32.totalorder %s24, 1
      %p178 = por %p176, %p177
      %p179 = scmp.ne.s32.totalorder %s170, %s171
      %p180 = scmp.eq.s32.totalorder %s24, 0
      %p181 = por %p179, %p180
      %p182 = scmp.ne.s32.totalorder %s170, %s171
      %p183 = scmp.eq.s32.totalorder %s25, 1
      %p184 = por %p182, %p183
      %p186 = scmp.ne.s32.totalorder %s171, %s185
      %p187 = scmp.eq.s32.totalorder %s25, 0
      %p188 = por %p186, %p187
      %s190 = sadd.s32 %s189, 1
      %p193 = scmp.eq.s32.totalorder %s19, 1
      %p194 = scmp.ne.s32.totalorder %s189, %s191
      %p195 = scmp.eq.s32.totalorder %s19, 0
      %p196 = por %p194, %p195
      %p197 = scmp.ne.s32.totalorder %s189, %s191
      %p198 = scmp.eq.s32.totalorder %s24, 1
      %p199 = por %p197, %p198
      %p200 = scmp.ne.s32.totalorder %s191, %s192
      %p201 = scmp.eq.s32.totalorder %s24, 0
      %p202 = por %p200, %p201
      %p203 = scmp.ne.s32.totalorder %s191, %s192
      %p204 = scmp.eq.s32.totalorder %s25, 1
      %p205 = por %p203, %p204
      %p207 = scmp.ne.s32.totalorder %s192, %s206
      %p208 = scmp.eq.s32.totalorder %s25, 0
      %p209 = por %p207, %p208
      %s211 = sadd.s32 %s210, 1
      %p214 = scmp.eq.s32.totalorder %s19, 1
      %p215 = scmp.ne.s32.totalorder %s210, %s212
      %p216 = scmp.eq.s32.totalorder %s19, 0
      %p217 = por %p215, %p216
      %p218 = scmp.ne.s32.totalorder %s210, %s212
      %p219 = scmp.eq.s32.totalorder %s24, 1
      %p220 = por %p218, %p219
      %p221 = scmp.ne.s32.totalorder %s212, %s213
      %p222 = scmp.eq.s32.totalorder %s24, 0
      %p223 = por %p221, %p222
      %p224 = scmp.ne.s32.totalorder %s212, %s213
      %p225 = scmp.eq.s32.totalorder %s25, 1
      %p226 = por %p224, %p225
      %p228 = scmp.ne.s32.totalorder %s213, %s227
      %p229 = scmp.eq.s32.totalorder %s25, 0
      %p230 = por %p228, %p229
      %s231 = ssub.s32 %s19, %s26
      %p232 = scmp.eq.s32.totalorder %s231, 0
      %s234 = sadd.s32 %s233, 1
      %s235 = scalar_select %p232, %s233, %s234
      %p238 = pneg %p232
      %p239 = scmp.eq.s32.totalorder %s19, 1
      %p240 = por %p238, %p239
      %p241 = scmp.ne.s32.totalorder %s233, %s236
      %p242 = scmp.eq.s32.totalorder %s19, 0
      %p243 = por %p241, %p242
      %p244 = scmp.ne.s32.totalorder %s233, %s236
      %p245 = scmp.eq.s32.totalorder %s24, 1
      %p246 = por %p244, %p245
      %p247 = scmp.ne.s32.totalorder %s236, %s237
      %p248 = scmp.eq.s32.totalorder %s24, 0
      %p249 = por %p247, %p248
      %p250 = scmp.ne.s32.totalorder %s236, %s237
      %p251 = scmp.eq.s32.totalorder %s25, 1
      %p252 = por %p250, %p251
      %p254 = scmp.ne.s32.totalorder %s237, %s253
      %p255 = scmp.eq.s32.totalorder %s25, 0
      %p256 = por %p254, %p255
      %p257 = scmp.le.s32.totalorder 1, %s19
      %p258 = scmp.lt.s32.totalorder %s19, 3
      %p259 = pnand %p257, %p258
      %p260 = pneg %p259
      // Predicated region
      $region9: #{tpu_custom_call.1} parent=5 // pred_check
        _
      $region10: #{tpu_custom_call.1} parent=5 // pred_check_branch
        %262 = sbr.rel (%p259) target = $region12
      $region11: #{tpu_custom_call.1} parent=5 // pred_region
        %s263 = ssub.s32 %s19, 1
        // Predicated region
        $region13: #{tpu_custom_call.1} parent=11 // pred_check
          %p264 = pneg %p118
        $region14: #{tpu_custom_call.1} parent=11 // pred_check_branch
          %266 = sbr.rel (%p264) target = $region16
        $region15: #{tpu_custom_call.1} parent=11 // pred_region
          _
        $region16: #{tpu_custom_call.1} parent=11 // pred_fallthru
          _
        // Predicated region
        $region17: #{tpu_custom_call.1} parent=11 // pred_check
          %p267 = pneg %p139
        $region18: #{tpu_custom_call.1} parent=11 // pred_check_branch
          %269 = sbr.rel (%p267) target = $region20
        $region19: #{tpu_custom_call.1} parent=11 // pred_region
          _
        $region20: #{tpu_custom_call.1} parent=11 // pred_fallthru
          _
        // Predicated region
        $region21: #{tpu_custom_call.1} parent=11 // pred_check
          %p270 = pneg %p160
        $region22: #{tpu_custom_call.1} parent=11 // pred_check_branch
          %272 = sbr.rel (%p270) target = $region24
        $region23: #{tpu_custom_call.1} parent=11 // pred_region
          %s274 = ssub.s32 3072, 3072
          %275 = vsyncadd [#allocation4], %s274
          %s276 = sshll.u32 [#allocation3], 4
          %s277 = int_to_ptr.vmem [resolvable:$true] %s276
          %282 = dma.hbm_to_vmem [thread:$0]  %s5, 3072, %s277, [#allocation4], 64, 64, 4
        $region24: #{tpu_custom_call.1} parent=11 // pred_fallthru
          _
        // Predicated region
        $region25: #{tpu_custom_call.1} parent=11 // pred_check
          %p283 = pneg %p181
        $region26: #{tpu_custom_call.1} parent=11 // pred_check_branch
          %285 = sbr.rel (%p283) target = $region28
        $region27: #{tpu_custom_call.1} parent=11 // pred_region
          _
        $region28: #{tpu_custom_call.1} parent=11 // pred_fallthru
          _
        // Predicated region
        $region29: #{tpu_custom_call.1} parent=11 // pred_check
          %p286 = pneg %p202
        $region30: #{tpu_custom_call.1} parent=11 // pred_check_branch
          %288 = sbr.rel (%p286) target = $region32
        $region31: #{tpu_custom_call.1} parent=11 // pred_region
          _
        $region32: #{tpu_custom_call.1} parent=11 // pred_fallthru
          _
        // Predicated region
        $region33: #{tpu_custom_call.1} parent=11 // pred_check
          %p289 = pneg %p223
        $region34: #{tpu_custom_call.1} parent=11 // pred_check_branch
          %291 = sbr.rel (%p289) target = $region36
        $region35: #{tpu_custom_call.1} parent=11 // pred_region
          _
        $region36: #{tpu_custom_call.1} parent=11 // pred_fallthru
          _
      $region12: #{tpu_custom_call.1} parent=5 // pred_fallthru
        _
      %p292 = scmp.lt.s32.totalorder %s19, 2
      // Predicated region
      $region37: #{tpu_custom_call.1} parent=5 // pred_check
        %p293 = pneg %p292
      $region38: #{tpu_custom_call.1} parent=5 // pred_check_branch
        %295 = sbr.rel (%p293) target = $region40
      $region39: #{tpu_custom_call.1} parent=5 // pred_region
        // Predicated region
        $region41: #{tpu_custom_call.1} parent=39 // pred_check
          %p296 = pneg %p39
        $region42: #{tpu_custom_call.1} parent=39 // pred_check_branch
          %298 = sbr.rel (%p296) target = $region44
        $region43: #{tpu_custom_call.1} parent=39 // pred_region
          %p299 = scmp.lt.s32.totalorder %s19, 1
          %s300 = scalar_select %p299, %s19, 1
          %s301 = smul.addr %s300, 8
          %s302 = scalar_lea.vmem %s0, %s301
        $region44: #{tpu_custom_call.1} parent=39 // pred_fallthru
          _
        // Predicated region
        $region45: #{tpu_custom_call.1} parent=39 // pred_check
          %p303 = pneg %p65
        $region46: #{tpu_custom_call.1} parent=39 // pred_check_branch
          %305 = sbr.rel (%p303) target = $region48
        $region47: #{tpu_custom_call.1} parent=39 // pred_region
          %p306 = scmp.lt.s32.totalorder %s19, 1
          %s307 = scalar_select %p306, %s19, 1
          %s308 = smul.addr %s307, 8
          %s309 = scalar_lea.vmem %s1, %s308
        $region48: #{tpu_custom_call.1} parent=39 // pred_fallthru
          _
        // Predicated region
        $region49: #{tpu_custom_call.1} parent=39 // pred_check
          %p310 = pneg %p91
        $region50: #{tpu_custom_call.1} parent=39 // pred_check_branch
          %312 = sbr.rel (%p310) target = $region52
        $region51: #{tpu_custom_call.1} parent=39 // pred_region
          %p313 = scmp.lt.s32.totalorder %s19, 1
          %s314 = scalar_select %p313, %s19, 1
          %s315 = smul.addr %s314, 8
          %s316 = scalar_lea.vmem %s2, %s315
        $region52: #{tpu_custom_call.1} parent=39 // pred_fallthru
          _
      $region40: #{tpu_custom_call.1} parent=5 // pred_fallthru
        _
      %p317 = scmp.le.s32.totalorder 1, %s19
      %p318 = scmp.lt.s32.totalorder %s19, 3
      %p319 = pnand %p317, %p318
      %p320 = pneg %p319
      // Predicated region
      $region53: #{tpu_custom_call.1} parent=5 // pred_check
        _
      $region54: #{tpu_custom_call.1} parent=5 // pred_check_branch
        %322 = sbr.rel (%p319) target = $region56
      $region55: #{tpu_custom_call.1} parent=5 // pred_region
        %s323 = ssub.s32 %s19, 1
        // Predicated region
        $region57: #{tpu_custom_call.1} parent=55 // pred_check
          %p324 = pneg %p160
        $region58: #{tpu_custom_call.1} parent=55 // pred_check_branch
          %326 = sbr.rel (%p324) target = $region60
        $region59: #{tpu_custom_call.1} parent=55 // pred_region
          %327 = dma.done [#allocation4], 3072
        $region60: #{tpu_custom_call.1} parent=55 // pred_fallthru
          _
        %p328 = scmp.lt.s32.totalorder %s24, 1
        %s329 = scalar_select %p328, %s24, 1
        %s330 = smul.addr %s329, 8
        %s331 = scalar_lea.vmem %s0, %s330
        %p332 = pneg %p45
        %p333 = pneg %p42
        %p334 = scmp.lt.s32.totalorder %s24, 1
        %s335 = scalar_select %p334, %s24, 1
        %s336 = smul.addr %s335, 8
        %s337 = scalar_lea.vmem %s1, %s336
        %p338 = pneg %p71
        %p339 = pneg %p68
        %p340 = scmp.lt.s32.totalorder %s24, 1
        %s341 = scalar_select %p340, %s24, 1
        %s342 = smul.addr %s341, 8
        %s343 = scalar_lea.vmem %s2, %s342
        %p344 = pneg %p97
        %p345 = pneg %p94
        %p346 = pneg %p118
        %p347 = pneg %p115
        %p348 = pneg %p139
        %p349 = pneg %p136
        %p350 = pneg %p160
        %p351 = pneg %p157
        %p352 = pneg %p181
        %p353 = pneg %p178
        %p354 = pneg %p202
        %p355 = pneg %p199
        %p356 = pneg %p223
        %p357 = pneg %p220
        %p358 = pneg %p249
        %p359 = pneg %p246
        %s360 = sand.u32 %s236, 1
        %s361 = scalar_lea.sflag [#allocation5], %s360
        %s362 = sand.u32 %s236, 1
        %s363 = smul.addr %s362, 8
        %s364 = scalar_lea.vmem [#allocation6], %s363
        %p365 = scmp.lt.s32.totalorder %s24, 1
        %s366 = scalar_select %p365, %s24, 1
        %s367 = smul.addr %s366, 8
        %s368 = scalar_lea.vmem %s0, %s367
        %p369 = scmp.lt.s32.totalorder %s24, 1
        %s370 = scalar_select %p369, %s24, 1
        %s371 = smul.addr %s370, 8
        %s372 = scalar_lea.vmem %s1, %s371
        %p373 = scmp.lt.s32.totalorder %s24, 1
        %s374 = scalar_select %p373, %s24, 1
        %s375 = smul.addr %s374, 8
        %s376 = scalar_lea.vmem %s2, %s375
        %v378 = vld [vmem:[%s3] sm:$0x7]
        %v379 = vld [vmem:[%s4] sm:$0x7]
        %v380 = vld [vmem:[%s368] sm:$0xff]
        %382 = vset.pattern.permute.xlu0 0
        %383 = vperm.xlu0 %382, %v380
        %v384 = vpop.permute.xlu0 %383
        %v386 = vlaneseq
        %v387 = vshrl.u32 %v386, 7
        %v388 = vsub.s32 0, %v387
        %v389 = vrot.slane %v378, %v388
        %v390 = vmul.f32 %v384, %v389
        %v391 = vlaneseq
        %v392 = vshrl.u32 %v391, 7
        %v393 = vsub.s32 0, %v392
        %v394 = vrot.slane %v379, %v393
        %v395 = vadd.f32 %v390, %v394
        %v396 = vand.u32 2147483647, %v395
        %vm397 = vcmp.le.f32.partialorder %v396, 0.7853982
        %vm398 = vcmp.lt.s32.totalorder %v395, 0
        %v399 = vand.u32 %v395, 2139095040
        %v400 = vshrl.u32 %v399, 23
        %v401 = vsub.s32 %v400, 127
        %v402 = vand.u32 2147483647, %v395
        %v403 = vand.u32 %v402, 8388607
        %v404 = vor.u32 %v403, 8388608
        %v405 = vsub.s32 0, %v404
        %v406 = vadd.s32 %v401, 1
        %vm407 = vcmp.gt.s32.totalorder %v406, 0
        %v408 = vsel %vm407, %v406, 0
        %v409 = vshrl.u32 %v408, 5
        %v410 = vand.u32 %v408, 31
        %v411 = vsub.s32 32, %v410
        %v412 = vshrl.u32 683565275, %v411
        %v413 = vshll.u32 683565275, %v410
        %v414 = vshrl.u32 2475754826, %v411
        %v415 = vor.u32 %v413, %v414
        %v416 = vshll.u32 2475754826, %v410
        %v417 = vshrl.u32 2131351028, %v411
        %v418 = vor.u32 %v416, %v417
        %v419 = vshll.u32 2131351028, %v410
        %v420 = vshrl.u32 2102212464, %v411
        %v421 = vor.u32 %v419, %v420
        %v422 = vshll.u32 2102212464, %v410
        %v423 = vshrl.u32 920167782, %v411
        %v424 = vor.u32 %v422, %v423
        %v425 = vshll.u32 920167782, %v410
        %v426 = vshrl.u32 1326507024, %v411
        %v427 = vor.u32 %v425, %v426
        %vm428 = vcmp.lt.s32.totalorder %v409, 1
        %vm429 = vcmp.lt.s32.totalorder %v409, 2
        %vm430 = vcmp.lt.s32.totalorder %v409, 3
        %vm431 = vcmp.lt.s32.totalorder %v409, 4
        %v432 = vsel %vm428, %v412, %v415
        %v433 = vsel %vm431, %v421, 2102212464
        %v434 = vsel %vm430, %v418, %v433
        %v435 = vsel %vm429, %v432, %v434
        %v436 = vsel %vm428, %v415, %v418
        %v437 = vsel %vm431, %v424, 920167782
        %v438 = vsel %vm430, %v421, %v437
        %v439 = vsel %vm429, %v436, %v438
        %v440 = vsel %vm428, %v418, %v421
        %v441 = vsel %vm431, %v427, 1326507024
        %v442 = vsel %vm430, %v424, %v441
        %v443 = vsel %vm429, %v440, %v442
        %v444 = vshll.u32 %v404, 8
        %v445 = vmul.u32.u64.compose %v444, %v443
        %v446 = vextract.low.u32 %v445
        %v447 = vextract.high.u32 %v445
        %v448 = vmul.u32.u64.compose %v444, %v439
        %v449 = vextract.low.u32 %v448
        %v450 = vextract.high.u32 %v448
        %v451 = vmul.u32 %v444, %v435
        %v452 = vadd.s32 %v447, %v449
        %vm453 = vc.u32 %v447, %v449
        %v454 = vadd.s32 %v450, 1
        %v455 = vsel %vm453, %v454, %v450
        %v456 = vadd.s32 %v451, %v455
        %v457 = vadd.s32 %v456, 536870912
        %v458 = vshrl.u32 %v457, 30
        %v459 = vshll.u32 %v458, 30
        %v460 = vsub.s32 %v456, %v459
        %vm461 = vcmp.lt.s32.totalorder %v460, 0
        %v462 = vsub.s32 0, %v460
        %v463 = vsel %vm461, %v462, %v460
        %v464 = vclz %v463
        %v465 = vsub.s32 %v464, 2
        %vm466 = vcmp.gt.s32.totalorder 0, %v465
        %v467 = vsel %vm466, 0, %v465
        %v468 = vsub.s32 32, %v467
        %v469 = vshll.u32 %v460, %v467
        %v470 = vshrl.u32 %v452, %v468
        %v471 = vor.u32 %v469, %v470
        %v472 = vsub.s32 4294967266, %v467
        %v473 = vadd.s32 %v472, 127
        %v474 = vshll.u32 %v473, 23
        %v475 = vor.u32 4788187, %v474
        %v476 = vand.u32 2147483647, %v475
        %v478 = vcvt.s32.f32 %v471
        %v479 = vmul.f32 %v478, %v476
        %v480 = vxor.u32 %v479, 2147483648
        %v481 = vsel %vm398, %v480, %v479
        %v482 = vsub.s32 4, %v458
        %v483 = vsel %vm398, %v482, %v458
        %v484 = vsel %vm397, %v395, %v481
        %v485 = vsel %vm397, 0, %v483
        %v486 = vcosq.f32.pop %v484
        %v487 = vsinq.f32.pop %v484
        %vm488 = vweird.f32 %v395
        %v489 = vadd.s32 %v485, 3
        %v490 = vand.u32 %v489, 3
        %vm491 = vcmp.lt.s32.totalorder %v490, 2
        %vm492 = vcmp.eq.s32.totalorder %v490, 0
        %v493 = vxor.u32 %v487, 2147483648
        %v494 = vsel %vm492, %v486, %v493
        %vm495 = vcmp.eq.s32.totalorder %v490, 2
        %v496 = vxor.u32 %v486, 2147483648
        %v497 = vsel %vm495, %v496, %v487
        %v498 = vsel %vm491, %v494, %v497
        %v499 = vsel %vm488, nan, %v498
        %v500 = vpack.c.bf16 %v499, %v499
        %501 = vst [vmem:[#allocation2] sm:$0xf] %v500
        %v502 = vld [vmem:[%s372] sm:$0xff]
        %504 = vset.pattern.permute.xlu0 0
        %505 = vperm.xlu0 %504, %v502
        %v506 = vpop.permute.xlu0 %505
        %v508 = vlaneseq
        %v509 = vshrl.u32 %v508, 7
        %v510 = vsub.s32 1, %v509
        %v511 = vrot.slane %v378, %v510
        %v512 = vmul.f32 %v506, %v511
        %v513 = vlaneseq
        %v514 = vshrl.u32 %v513, 7
        %v515 = vsub.s32 1, %v514
        %v516 = vrot.slane %v379, %v515
        %v517 = vadd.f32 %v512, %v516
        %v518 = vand.u32 2147483647, %v517
        %vm519 = vcmp.le.f32.partialorder %v518, 0.7853982
        %vm520 = vcmp.lt.s32.totalorder %v517, 0
        %v521 = vand.u32 %v517, 2139095040
        %v522 = vshrl.u32 %v521, 23
        %v523 = vsub.s32 %v522, 127
        %v524 = vand.u32 2147483647, %v517
        %v525 = vand.u32 %v524, 8388607
        %v526 = vor.u32 %v525, 8388608
        %v527 = vsub.s32 0, %v526
        %v528 = vadd.s32 %v523, 1
        %vm529 = vcmp.gt.s32.totalorder %v528, 0
        %v530 = vsel %vm529, %v528, 0
        %v531 = vshrl.u32 %v530, 5
        %v532 = vand.u32 %v530, 31
        %v533 = vsub.s32 32, %v532
        %v534 = vshrl.u32 683565275, %v533
        %v535 = vshll.u32 683565275, %v532
        %v536 = vshrl.u32 2475754826, %v533
        %v537 = vor.u32 %v535, %v536
        %v538 = vshll.u32 2475754826, %v532
        %v539 = vshrl.u32 2131351028, %v533
        %v540 = vor.u32 %v538, %v539
        %v541 = vshll.u32 2131351028, %v532
        %v542 = vshrl.u32 2102212464, %v533
        %v543 = vor.u32 %v541, %v542
        %v544 = vshll.u32 2102212464, %v532
        %v545 = vshrl.u32 920167782, %v533
        %v546 = vor.u32 %v544, %v545
        %v547 = vshll.u32 920167782, %v532
        %v548 = vshrl.u32 1326507024, %v533
        %v549 = vor.u32 %v547, %v548
        %vm550 = vcmp.lt.s32.totalorder %v531, 1
        %vm551 = vcmp.lt.s32.totalorder %v531, 2
        %vm552 = vcmp.lt.s32.totalorder %v531, 3
        %vm553 = vcmp.lt.s32.totalorder %v531, 4
        %v554 = vsel %vm550, %v534, %v537
        %v555 = vsel %vm553, %v543, 2102212464
        %v556 = vsel %vm552, %v540, %v555
        %v557 = vsel %vm551, %v554, %v556
        %v558 = vsel %vm550, %v537, %v540
        %v559 = vsel %vm553, %v546, 920167782
        %v560 = vsel %vm552, %v543, %v559
        %v561 = vsel %vm551, %v558, %v560
        %v562 = vsel %vm550, %v540, %v543
        %v563 = vsel %vm553, %v549, 1326507024
        %v564 = vsel %vm552, %v546, %v563
        %v565 = vsel %vm551, %v562, %v564
        %v566 = vshll.u32 %v526, 8
        %v567 = vmul.u32.u64.compose %v566, %v565
        %v568 = vextract.low.u32 %v567
        %v569 = vextract.high.u32 %v567
        %v570 = vmul.u32.u64.compose %v566, %v561
        %v571 = vextract.low.u32 %v570
        %v572 = vextract.high.u32 %v570
        %v573 = vmul.u32 %v566, %v557
        %v574 = vadd.s32 %v569, %v571
        %vm575 = vc.u32 %v569, %v571
        %v576 = vadd.s32 %v572, 1
        %v577 = vsel %vm575, %v576, %v572
        %v578 = vadd.s32 %v573, %v577
        %v579 = vadd.s32 %v578, 536870912
        %v580 = vshrl.u32 %v579, 30
        %v581 = vshll.u32 %v580, 30
        %v582 = vsub.s32 %v578, %v581
        %vm583 = vcmp.lt.s32.totalorder %v582, 0
        %v584 = vsub.s32 0, %v582
        %v585 = vsel %vm583, %v584, %v582
        %v586 = vclz %v585
        %v587 = vsub.s32 %v586, 2
        %vm588 = vcmp.gt.s32.totalorder 0, %v587
        %v589 = vsel %vm588, 0, %v587
        %v590 = vsub.s32 32, %v589
        %v591 = vshll.u32 %v582, %v589
        %v592 = vshrl.u32 %v574, %v590
        %v593 = vor.u32 %v591, %v592
        %v594 = vsub.s32 4294967266, %v589
        %v595 = vadd.s32 %v594, 127
        %v596 = vshll.u32 %v595, 23
        %v597 = vor.u32 4788187, %v596
        %v598 = vand.u32 2147483647, %v597
        %v600 = vcvt.s32.f32 %v593
        %v601 = vmul.f32 %v600, %v598
        %v602 = vxor.u32 %v601, 2147483648
        %v603 = vsel %vm520, %v602, %v601
        %v604 = vsub.s32 4, %v580
        %v605 = vsel %vm520, %v604, %v580
        %v606 = vsel %vm519, %v517, %v603
        %v607 = vsel %vm519, 0, %v605
        %v608 = vcosq.f32.pop %v606
        %v609 = vsinq.f32.pop %v606
        %vm610 = vweird.f32 %v517
        %v611 = vadd.s32 %v607, 3
        %v612 = vand.u32 %v611, 3
        %vm613 = vcmp.lt.s32.totalorder %v612, 2
        %vm614 = vcmp.eq.s32.totalorder %v612, 0
        %v615 = vxor.u32 %v609, 2147483648
        %v616 = vsel %vm614, %v608, %v615
        %vm617 = vcmp.eq.s32.totalorder %v612, 2
        %v618 = vxor.u32 %v608, 2147483648
        %v619 = vsel %vm617, %v618, %v609
        %v620 = vsel %vm613, %v616, %v619
        %v621 = vsel %vm610, nan, %v620
        %v622 = vpack.c.bf16 %v621, %v621
        %623 = vst [vmem:[#allocation2 + $0x4] sm:$0xf] %v622
        %v624 = vld [vmem:[%s376] sm:$0xff]
        %626 = vset.pattern.permute.xlu0 0
        %627 = vperm.xlu0 %626, %v624
        %v628 = vpop.permute.xlu0 %627
        %v630 = vlaneseq
        %v631 = vshrl.u32 %v630, 7
        %v632 = vsub.s32 2, %v631
        %v633 = vrot.slane %v378, %v632
        %v634 = vmul.f32 %v628, %v633
        %v635 = vlaneseq
        %v636 = vshrl.u32 %v635, 7
        %v637 = vsub.s32 2, %v636
        %v638 = vrot.slane %v379, %v637
        %v639 = vadd.f32 %v634, %v638
        %v640 = vand.u32 2147483647, %v639
        %vm641 = vcmp.le.f32.partialorder %v640, 0.7853982
        %vm642 = vcmp.lt.s32.totalorder %v639, 0
        %v643 = vand.u32 %v639, 2139095040
        %v644 = vshrl.u32 %v643, 23
        %v645 = vsub.s32 %v644, 127
        %v646 = vand.u32 2147483647, %v639
        %v647 = vand.u32 %v646, 8388607
        %v648 = vor.u32 %v647, 8388608
        %v649 = vsub.s32 0, %v648
        %v650 = vadd.s32 %v645, 1
        %vm651 = vcmp.gt.s32.totalorder %v650, 0
        %v652 = vsel %vm651, %v650, 0
        %v653 = vshrl.u32 %v652, 5
        %v654 = vand.u32 %v652, 31
        %v655 = vsub.s32 32, %v654
        %v656 = vshrl.u32 683565275, %v655
        %v657 = vshll.u32 683565275, %v654
        %v658 = vshrl.u32 2475754826, %v655
        %v659 = vor.u32 %v657, %v658
        %v660 = vshll.u32 2475754826, %v654
        %v661 = vshrl.u32 2131351028, %v655
        %v662 = vor.u32 %v660, %v661
        %v663 = vshll.u32 2131351028, %v654
        %v664 = vshrl.u32 2102212464, %v655
        %v665 = vor.u32 %v663, %v664
        %v666 = vshll.u32 2102212464, %v654
        %v667 = vshrl.u32 920167782, %v655
        %v668 = vor.u32 %v666, %v667
        %v669 = vshll.u32 920167782, %v654
        %v670 = vshrl.u32 1326507024, %v655
        %v671 = vor.u32 %v669, %v670
        %vm672 = vcmp.lt.s32.totalorder %v653, 1
        %vm673 = vcmp.lt.s32.totalorder %v653, 2
        %vm674 = vcmp.lt.s32.totalorder %v653, 3
        %vm675 = vcmp.lt.s32.totalorder %v653, 4
        %v676 = vsel %vm672, %v656, %v659
        %v677 = vsel %vm675, %v665, 2102212464
        %v678 = vsel %vm674, %v662, %v677
        %v679 = vsel %vm673, %v676, %v678
        %v680 = vsel %vm672, %v659, %v662
        %v681 = vsel %vm675, %v668, 920167782
        %v682 = vsel %vm674, %v665, %v681
        %v683 = vsel %vm673, %v680, %v682
        %v684 = vsel %vm672, %v662, %v665
        %v685 = vsel %vm675, %v671, 1326507024
        %v686 = vsel %vm674, %v668, %v685
        %v687 = vsel %vm673, %v684, %v686
        %v688 = vshll.u32 %v648, 8
        %v689 = vmul.u32.u64.compose %v688, %v687
        %v690 = vextract.low.u32 %v689
        %v691 = vextract.high.u32 %v689
        %v692 = vmul.u32.u64.compose %v688, %v683
        %v693 = vextract.low.u32 %v692
        %v694 = vextract.high.u32 %v692
        %v695 = vmul.u32 %v688, %v679
        %v696 = vadd.s32 %v691, %v693
        %vm697 = vc.u32 %v691, %v693
        %v698 = vadd.s32 %v694, 1
        %v699 = vsel %vm697, %v698, %v694
        %v700 = vadd.s32 %v695, %v699
        %v701 = vadd.s32 %v700, 536870912
        %v702 = vshrl.u32 %v701, 30
        %v703 = vshll.u32 %v702, 30
        %v704 = vsub.s32 %v700, %v703
        %vm705 = vcmp.lt.s32.totalorder %v704, 0
        %v706 = vsub.s32 0, %v704
        %v707 = vsel %vm705, %v706, %v704
        %v708 = vclz %v707
        %v709 = vsub.s32 %v708, 2
        %vm710 = vcmp.gt.s32.totalorder 0, %v709
        %v711 = vsel %vm710, 0, %v709
        %v712 = vsub.s32 32, %v711
        %v713 = vshll.u32 %v704, %v711
        %v714 = vshrl.u32 %v696, %v712
        %v715 = vor.u32 %v713, %v714
        %v716 = vsub.s32 4294967266, %v711
        %v717 = vadd.s32 %v716, 127
        %v718 = vshll.u32 %v717, 23
        %v719 = vor.u32 4788187, %v718
        %v720 = vand.u32 2147483647, %v719
        %v722 = vcvt.s32.f32 %v715
        %v723 = vmul.f32 %v722, %v720
        %v724 = vxor.u32 %v723, 2147483648
        %v725 = vsel %vm642, %v724, %v723
        %v726 = vsub.s32 4, %v702
        %v727 = vsel %vm642, %v726, %v702
        %v728 = vsel %vm641, %v639, %v725
        %v729 = vsel %vm641, 0, %v727
        %v730 = vcosq.f32.pop %v728
        %v731 = vsinq.f32.pop %v728
        %vm732 = vweird.f32 %v639
        %v733 = vadd.s32 %v729, 3
        %v734 = vand.u32 %v733, 3
        %vm735 = vcmp.lt.s32.totalorder %v734, 2
        %vm736 = vcmp.eq.s32.totalorder %v734, 0
        %v737 = vxor.u32 %v731, 2147483648
        %v738 = vsel %vm736, %v730, %v737
        %vm739 = vcmp.eq.s32.totalorder %v734, 2
        %v740 = vxor.u32 %v730, 2147483648
        %v741 = vsel %vm739, %v740, %v731
        %v742 = vsel %vm735, %v738, %v741
        %v743 = vsel %vm732, nan, %v742
        %v744 = vpack.c.bf16 %v743, %v743
        %745 = vst [vmem:[#allocation2 + $0x8] sm:$0xf] %v744
        %v746 = vld [vmem:[#allocation2] sm:$0xff]
        %v747 = vld [vmem:[#allocation2 + $0x8] sm:$0xf]
        %v748 = vld [vmem:[#allocation3] sm:$0xf]
        %v749 = vld [vmem:[#allocation3 + $0x4] sm:$0xf]
        %v750 = vld [vmem:[#allocation3 + $0x8] sm:$0xf]
        %v751 = vld [vmem:[#allocation3 + $0xc] sm:$0xf]
        %v752 = vld [vmem:[#allocation3 + $0x10] sm:$0xf]
        %v753 = vld [vmem:[#allocation3 + $0x14] sm:$0xf]
        %v754 = vld [vmem:[#allocation3 + $0x18] sm:$0xf]
        %v755 = vld [vmem:[#allocation3 + $0x1c] sm:$0xf]
        %v756 = vld [vmem:[#allocation3 + $0x20] sm:$0xf]
        %v757 = vld [vmem:[#allocation3 + $0x24] sm:$0xf]
        %v758 = vld [vmem:[#allocation3 + $0x28] sm:$0xf]
        %v759 = vld [vmem:[#allocation3 + $0x2c] sm:$0xf]
        %v760 = vld [vmem:[#allocation3 + $0x30] sm:$0xf]
        %v761 = vld [vmem:[#allocation3 + $0x34] sm:$0xf]
        %v762 = vld [vmem:[#allocation3 + $0x38] sm:$0xf]
        %v763 = vld [vmem:[#allocation3 + $0x3c] sm:$0xf]
        %v764 = vld [vmem:[#allocation3 + $0x40] sm:$0xf]
        %v765 = vld [vmem:[#allocation3 + $0x44] sm:$0xf]
        %v766 = vld [vmem:[#allocation3 + $0x48] sm:$0xf]
        %v767 = vld [vmem:[#allocation3 + $0x4c] sm:$0xf]
        %v768 = vld [vmem:[#allocation3 + $0x50] sm:$0xf]
        %v769 = vld [vmem:[#allocation3 + $0x54] sm:$0xf]
        %v770 = vld [vmem:[#allocation3 + $0x58] sm:$0xf]
        %v771 = vld [vmem:[#allocation3 + $0x5c] sm:$0xf]
        %v772 = vld [vmem:[#allocation3 + $0x60] sm:$0xf]
        %v773 = vld [vmem:[#allocation3 + $0x64] sm:$0xf]
        %v774 = vld [vmem:[#allocation3 + $0x68] sm:$0xf]
        %v775 = vld [vmem:[#allocation3 + $0x6c] sm:$0xf]
        %v776 = vld [vmem:[#allocation3 + $0x70] sm:$0xf]
        %v777 = vld [vmem:[#allocation3 + $0x74] sm:$0xf]
        %v778 = vld [vmem:[#allocation3 + $0x78] sm:$0xf]
        %v779 = vld [vmem:[#allocation3 + $0x7c] sm:$0xf]
        %v780 = vld [vmem:[#allocation3 + $0x80] sm:$0xf]
        %v781 = vld [vmem:[#allocation3 + $0x84] sm:$0xf]
        %v782 = vld [vmem:[#allocation3 + $0x88] sm:$0xf]
        %v783 = vld [vmem:[#allocation3 + $0x8c] sm:$0xf]
        %v784 = vld [vmem:[#allocation3 + $0x90] sm:$0xf]
        %v785 = vld [vmem:[#allocation3 + $0x94] sm:$0xf]
        %v786 = vld [vmem:[#allocation3 + $0x98] sm:$0xf]
        %v787 = vld [vmem:[#allocation3 + $0x9c] sm:$0xf]
        %v788 = vld [vmem:[#allocation3 + $0xa0] sm:$0xf]
        %v789 = vld [vmem:[#allocation3 + $0xa4] sm:$0xf]
        %v790 = vld [vmem:[#allocation3 + $0xa8] sm:$0xf]
        %v791 = vld [vmem:[#allocation3 + $0xac] sm:$0xf]
        %v792 = vld [vmem:[#allocation3 + $0xb0] sm:$0xf]
        %v793 = vld [vmem:[#allocation3 + $0xb4] sm:$0xf]
        %v794 = vld [vmem:[#allocation3 + $0xb8] sm:$0xf]
        %v795 = vld [vmem:[#allocation3 + $0xbc] sm:$0xf]
        %v796 = vld [vmem:[%s6] sm:$0x1]
        %v798 = vlaneseq
        %v799 = vshrl.u32 %v798, 7
        %v800 = vsub.s32 0, %v799
        %v801 = vrot.slane %v796, %v800
        %v805 = vunpack.c.l.b16 %v746
        %v806 = vunpack.c.h.b16 %v746
        %v807 = vunpack.c.l.b16 %v747
        %v808 = vpack.c.b16 %v805, %v805
        %v809 = vpack.c.b16 %v806, %v806
        %v810 = vpack.c.b16 %v807, %v807
        %v862 = vunpack.c.l.b16 %v748
        %v863 = vunpack.c.l.b16 %v749
        %v864 = vunpack.c.l.b16 %v750
        %v865 = vunpack.c.l.b16 %v751
        %v866 = vunpack.c.l.b16 %v752
        %v867 = vunpack.c.l.b16 %v753
        %v868 = vunpack.c.l.b16 %v754
        %v869 = vunpack.c.l.b16 %v755
        %v870 = vunpack.c.l.b16 %v756
        %v871 = vunpack.c.l.b16 %v757
        %v872 = vunpack.c.l.b16 %v758
        %v873 = vunpack.c.l.b16 %v759
        %v874 = vunpack.c.l.b16 %v760
        %v875 = vunpack.c.l.b16 %v761
        %v876 = vunpack.c.l.b16 %v762
        %v877 = vunpack.c.l.b16 %v763
        %v878 = vunpack.c.l.b16 %v764
        %v879 = vunpack.c.l.b16 %v765
        %v880 = vunpack.c.l.b16 %v766
        %v881 = vunpack.c.l.b16 %v767
        %v882 = vunpack.c.l.b16 %v768
        %v883 = vunpack.c.l.b16 %v769
        %v884 = vunpack.c.l.b16 %v770
        %v885 = vunpack.c.l.b16 %v771
        %v886 = vunpack.c.l.b16 %v772
        %v887 = vunpack.c.l.b16 %v773
        %v888 = vunpack.c.l.b16 %v774
        %v889 = vunpack.c.l.b16 %v775
        %v890 = vunpack.c.l.b16 %v776
        %v891 = vunpack.c.l.b16 %v777
        %v892 = vunpack.c.l.b16 %v778
        %v893 = vunpack.c.l.b16 %v779
        %v894 = vunpack.c.l.b16 %v780
        %v895 = vunpack.c.l.b16 %v781
        %v896 = vunpack.c.l.b16 %v782
        %v897 = vunpack.c.l.b16 %v783
        %v898 = vunpack.c.l.b16 %v784
        %v899 = vunpack.c.l.b16 %v785
        %v900 = vunpack.c.l.b16 %v786
        %v901 = vunpack.c.l.b16 %v787
        %v902 = vunpack.c.l.b16 %v788
        %v903 = vunpack.c.l.b16 %v789
        %v904 = vunpack.c.l.b16 %v790
        %v905 = vunpack.c.l.b16 %v791
        %v906 = vunpack.c.l.b16 %v792
        %v907 = vunpack.c.l.b16 %v793
        %v908 = vunpack.c.l.b16 %v794
        %v909 = vunpack.c.l.b16 %v795
        %v910 = vpack.c.b16 %v863, %v862
        %v911 = vpack.c.b16 %v865, %v864
        %v912 = vpack.c.b16 %v867, %v866
        %v913 = vpack.c.b16 %v869, %v868
        %v914 = vpack.c.b16 %v871, %v870
        %v915 = vpack.c.b16 %v873, %v872
        %v916 = vpack.c.b16 %v875, %v874
        %v917 = vpack.c.b16 %v877, %v876
        %v918 = vpack.c.b16 %v879, %v878
        %v919 = vpack.c.b16 %v881, %v880
        %v920 = vpack.c.b16 %v883, %v882
        %v921 = vpack.c.b16 %v885, %v884
        %v922 = vpack.c.b16 %v887, %v886
        %v923 = vpack.c.b16 %v889, %v888
        %v924 = vpack.c.b16 %v891, %v890
        %v925 = vpack.c.b16 %v893, %v892
        %v926 = vpack.c.b16 %v895, %v894
        %v927 = vpack.c.b16 %v897, %v896
        %v928 = vpack.c.b16 %v899, %v898
        %v929 = vpack.c.b16 %v901, %v900
        %v930 = vpack.c.b16 %v903, %v902
        %v931 = vpack.c.b16 %v905, %v904
        %v932 = vpack.c.b16 %v907, %v906
        %v933 = vpack.c.b16 %v909, %v908
        %958 = vmatprep.subr.bf16.mxu0 0
        %959 = vmatpush1.bf16.msra.mxu0 %v910
        %960 = vmatprep.subr.bf16.mxu0 0
        %961 = vmatpush1.bf16.msra.mxu0 %v911
        %962 = vmatprep.subr.bf16.mxu0 0
        %963 = vmatpush1.bf16.msra.mxu0 %v912
        %964 = vmatprep.subr.bf16.mxu0 0
        %965 = vmatpush1.bf16.msra.mxu0 %v913
        %966 = vmatprep.subr.bf16.mxu0 0
        %967 = vmatpush1.bf16.msra.mxu0 %v914
        %968 = vmatprep.subr.bf16.mxu0 0
        %969 = vmatpush1.bf16.msra.mxu0 %v915
        %970 = vmatprep.subr.bf16.mxu0 0
        %971 = vmatpush1.bf16.msra.mxu0 %v916
        %972 = vmatprep.subr.bf16.mxu0 0
        %973 = vmatpush1.bf16.msra.mxu0 %v917
        %974 = vmatprep.subr.bf16.mxu0 0
        %975 = vmatpush1.bf16.msra.mxu0 %v918
        %976 = vmatprep.subr.bf16.mxu0 0
        %977 = vmatpush1.bf16.msra.mxu0 %v919
        %978 = vmatprep.subr.bf16.mxu0 0
        %979 = vmatpush1.bf16.msra.mxu0 %v920
        %980 = vmatprep.subr.bf16.mxu0 0
        %981 = vmatpush1.bf16.msra.mxu0 %v921
        %982 = vmatprep.subr.bf16.mxu0 0
        %983 = vmatpush1.bf16.msra.mxu0 %v922
        %984 = vmatprep.subr.bf16.mxu0 0
        %985 = vmatpush1.bf16.msra.mxu0 %v923
        %986 = vmatprep.subr.bf16.mxu0 0
        %987 = vmatpush1.bf16.msra.mxu0 %v924
        %988 = vmatprep.subr.bf16.mxu0 0
        %989 = vmatpush1.bf16.msra.mxu0 %v925
        %990 = vmatprep.mubr.bf16.mxu0 %v809
        %991 = vmatmul.mubr.bf16.gmra.mrb[0].mxu0 %v808
        %v992 = vpop.f32.mrb[0].mxu0
        %v993 = vadd.f32 %v801, %v992
        %v994 = vpop.f32.mrb[0].mxu0
        %v995 = vpop.f32.mrb[0].mxu0
        %v996 = vpop.f32.mrb[0].mxu0
        %997 = vdwg.mxu0
        %998 = vmatprep.subr.bf16.mxu0 0
        %999 = vmatpush1.bf16.msra.mxu0 %v926
        %1000 = vmatprep.subr.bf16.mxu0 0
        %1001 = vmatpush1.bf16.msra.mxu0 %v927
        %1002 = vmatprep.subr.bf16.mxu0 0
        %1003 = vmatpush1.bf16.msra.mxu0 %v928
        %1004 = vmatprep.subr.bf16.mxu0 0
        %1005 = vmatpush1.bf16.msra.mxu0 %v929
        %1006 = vmatprep.subr.bf16.mxu0 0
        %1007 = vmatpush1.bf16.msra.mxu0 %v930
        %1008 = vmatprep.subr.bf16.mxu0 0
        %1009 = vmatpush1.bf16.msra.mxu0 %v931
        %1010 = vmatprep.subr.bf16.mxu0 0
        %1011 = vmatpush1.bf16.msra.mxu0 %v932
        %1012 = vmatprep.subr.bf16.mxu0 0
        %1013 = vmatpush1.bf16.msra.mxu0 %v933
        %1014 = vmatprep.subr.bf16.mxu0 0
        %1015 = vmatpush1.bf16.msra.mxu0 0
        %1016 = vmatprep.subr.bf16.mxu0 0
        %1017 = vmatpush1.bf16.msra.mxu0 0
        %1018 = vmatprep.subr.bf16.mxu0 0
        %1019 = vmatpush1.bf16.msra.mxu0 0
        %1020 = vmatprep.subr.bf16.mxu0 0
        %1021 = vmatpush1.bf16.msra.mxu0 0
        %1022 = vmatprep.subr.bf16.mxu0 0
        %1023 = vmatpush1.bf16.msra.mxu0 0
        %1024 = vmatprep.subr.bf16.mxu0 0
        %1025 = vmatpush1.bf16.msra.mxu0 0
        %1026 = vmatprep.subr.bf16.mxu0 0
        %1027 = vmatpush1.bf16.msra.mxu0 0
        %1028 = vmatprep.subr.bf16.mxu0 0
        %1029 = vmatpush1.bf16.msra.mxu0 0
        %1030 = vmatprep.mubr.bf16.mxu0 0
        %1031 = vmatmul.mubr.bf16.gmra.mrb[0].mxu0 %v810
        %v1032 = vpop.f32.mrb[0].mxu0
        %v1033 = vadd.f32 %v993, %v1032
        %v1034 = vpop.f32.mrb[0].mxu0
        %v1035 = vpop.f32.mrb[0].mxu0
        %v1036 = vpop.f32.mrb[0].mxu0
        %1037 = vdwg.mxu0
        %v1038 = vmax.f32 %v1033, 0.0
        %v1039 = vpack.c.bf16 %v1038, %v1038
        %v1040 = vld [vmem:[%s7] sm:$0xf]
        %v1041 = vld [vmem:[%s7 + $0x4] sm:$0xf]
        %v1042 = vld [vmem:[%s7 + $0x8] sm:$0xf]
        %v1043 = vld [vmem:[%s7 + $0xc] sm:$0xf]
        %v1044 = vld [vmem:[%s7 + $0x10] sm:$0xf]
        %v1045 = vld [vmem:[%s7 + $0x14] sm:$0xf]
        %v1046 = vld [vmem:[%s7 + $0x18] sm:$0xf]
        %v1047 = vld [vmem:[%s7 + $0x1c] sm:$0xf]
        %v1048 = vld [vmem:[%s7 + $0x20] sm:$0xf]
        %v1049 = vld [vmem:[%s7 + $0x24] sm:$0xf]
        %v1050 = vld [vmem:[%s7 + $0x28] sm:$0xf]
        %v1051 = vld [vmem:[%s7 + $0x2c] sm:$0xf]
        %v1052 = vld [vmem:[%s7 + $0x30] sm:$0xf]
        %v1053 = vld [vmem:[%s7 + $0x34] sm:$0xf]
        %v1054 = vld [vmem:[%s7 + $0x38] sm:$0xf]
        %v1055 = vld [vmem:[%s7 + $0x3c] sm:$0xf]
        %v1056 = vld [vmem:[%s8] sm:$0x1]
        %v1058 = vlaneseq
        %v1059 = vshrl.u32 %v1058, 7
        %v1060 = vsub.s32 0, %v1059
        %v1061 = vrot.slane %v1056, %v1060
        %v1079 = vunpack.c.l.b16 %v1040
        %v1080 = vunpack.c.l.b16 %v1041
        %v1081 = vunpack.c.l.b16 %v1042
        %v1082 = vunpack.c.l.b16 %v1043
        %v1083 = vunpack.c.l.b16 %v1044
        %v1084 = vunpack.c.l.b16 %v1045
        %v1085 = vunpack.c.l.b16 %v1046
        %v1086 = vunpack.c.l.b16 %v1047
        %v1087 = vunpack.c.l.b16 %v1048
        %v1088 = vunpack.c.l.b16 %v1049
        %v1089 = vunpack.c.l.b16 %v1050
        %v1090 = vunpack.c.l.b16 %v1051
        %v1091 = vunpack.c.l.b16 %v1052
        %v1092 = vunpack.c.l.b16 %v1053
        %v1093 = vunpack.c.l.b16 %v1054
        %v1094 = vunpack.c.l.b16 %v1055
        %v1095 = vpack.c.b16 %v1080, %v1079
        %v1096 = vpack.c.b16 %v1082, %v1081
        %v1097 = vpack.c.b16 %v1084, %v1083
        %v1098 = vpack.c.b16 %v1086, %v1085
        %v1099 = vpack.c.b16 %v1088, %v1087
        %v1100 = vpack.c.b16 %v1090, %v1089
        %v1101 = vpack.c.b16 %v1092, %v1091
        %v1102 = vpack.c.b16 %v1094, %v1093
        %1111 = vmatprep.subr.bf16.mxu0 0
        %1112 = vmatpush1.bf16.msra.mxu0 %v1095
        %1113 = vmatprep.subr.bf16.mxu0 0
        %1114 = vmatpush1.bf16.msra.mxu0 %v1096
        %1115 = vmatprep.subr.bf16.mxu0 0
        %1116 = vmatpush1.bf16.msra.mxu0 %v1097
        %1117 = vmatprep.subr.bf16.mxu0 0
        %1118 = vmatpush1.bf16.msra.mxu0 %v1098
        %1119 = vmatprep.subr.bf16.mxu0 0
        %1120 = vmatpush1.bf16.msra.mxu0 %v1099
        %1121 = vmatprep.subr.bf16.mxu0 0
        %1122 = vmatpush1.bf16.msra.mxu0 %v1100
        %1123 = vmatprep.subr.bf16.mxu0 0
        %1124 = vmatpush1.bf16.msra.mxu0 %v1101
        %1125 = vmatprep.subr.bf16.mxu0 0
        %1126 = vmatpush1.bf16.msra.mxu0 %v1102
        %1127 = vmatprep.subr.bf16.mxu0 0
        %1128 = vmatpush1.bf16.msra.mxu0 0
        %1129 = vmatprep.subr.bf16.mxu0 0
        %1130 = vmatpush1.bf16.msra.mxu0 0
        %1131 = vmatprep.subr.bf16.mxu0 0
        %1132 = vmatpush1.bf16.msra.mxu0 0
        %1133 = vmatprep.subr.bf16.mxu0 0
        %1134 = vmatpush1.bf16.msra.mxu0 0
        %1135 = vmatprep.subr.bf16.mxu0 0
        %1136 = vmatpush1.bf16.msra.mxu0 0
        %1137 = vmatprep.subr.bf16.mxu0 0
        %1138 = vmatpush1.bf16.msra.mxu0 0
        %1139 = vmatprep.subr.bf16.mxu0 0
        %1140 = vmatpush1.bf16.msra.mxu0 0
        %1141 = vmatprep.subr.bf16.mxu0 0
        %1142 = vmatpush1.bf16.msra.mxu0 0
        %1143 = vmatprep.mubr.bf16.mxu0 0
        %1144 = vmatmul.mubr.bf16.gmra.mrb[0].mxu0 %v1039
        %v1145 = vpop.f32.mrb[0].mxu0
        %v1146 = vadd.f32 %v1061, %v1145
        %v1147 = vpop.f32.mrb[0].mxu0
        %v1148 = vpop.f32.mrb[0].mxu0
        %v1149 = vpop.f32.mrb[0].mxu0
        %1150 = vdwg.mxu0
        %1151 = vst [vmem:[%s364] sm:$0xff] %v1146
        %s1152 = sand.u32 %s236, 1
        %s1153 = scalar_lea.sflag [#allocation5], %s1152
        %s1154 = sand.u32 %s236, 1
        %s1155 = smul.addr %s1154, 8
        %s1156 = scalar_lea.vmem [#allocation6], %s1155
        // Predicated region
        $region61: #{tpu_custom_call.1} parent=55 // pred_check
          %p1157 = pneg %p246
        $region62: #{tpu_custom_call.1} parent=55 // pred_check_branch
          %1159 = sbr.rel (%p1157) target = $region64
        $region63: #{tpu_custom_call.1} parent=55 // pred_region
          %s1161 = ssub.s32 128, 128
          %1162 = vsyncadd %s1153, %s1161
          %s1163 = smul.addr %s24, 128
          %s1164 = scalar_lea.hbm %s9, %s1163
          %s1166 = sshll.u32 %s1156, 4
          %s1167 = int_to_ptr.vmem [resolvable:$true] %s1166
          %1169 = dma.vmem_to_hbm [thread:$0]  %s1167, 128, %s1164, %s1153
        $region64: #{tpu_custom_call.1} parent=55 // pred_fallthru
          _
      $region56: #{tpu_custom_call.1} parent=5 // pred_fallthru
        _
      %p1170 = scmp.le.s32.totalorder 2, %s19
      // Predicated region
      $region65: #{tpu_custom_call.1} parent=5 // pred_check
        %p1171 = pneg %p1170
      $region66: #{tpu_custom_call.1} parent=5 // pred_check_branch
        %1173 = sbr.rel (%p1171) target = $region68
      $region67: #{tpu_custom_call.1} parent=5 // pred_region
        %s1174 = ssub.s32 %s19, 2
        // Predicated region
        $region69: #{tpu_custom_call.1} parent=67 // pred_check
          %p1175 = pneg %p252
        $region70: #{tpu_custom_call.1} parent=67 // pred_check_branch
          %1177 = sbr.rel (%p1175) target = $region72
        $region71: #{tpu_custom_call.1} parent=67 // pred_region
          %s1178 = sand.u32 %s237, 1
          %s1179 = scalar_lea.sflag [#allocation5], %s1178
          %s1180 = sand.u32 %s237, 1
          %s1181 = smul.addr %s1180, 8
          %s1182 = scalar_lea.vmem [#allocation6], %s1181
          %1183 = dma.done %s1179, 128
        $region72: #{tpu_custom_call.1} parent=67 // pred_fallthru
          _
      $region68: #{tpu_custom_call.1} parent=5 // pred_fallthru
        _
    $region6: #{tpu_custom_call.1} parent=1 // loop_footer
      %s23 = sadd.s32 1, %s19
    $region7: #{tpu_custom_call.1} parent=1 // loop_footer_branch
      %18 = sbr.rel target = $region3
    $region8: #{tpu_custom_call.1} parent=1 // loop_exit
      _
    %1184 = vsyncpa [#allocation4], 1
    %s1185 = scalar_lea.sflag [#allocation4], 1
    %1186 = vsyncpa %s1185, 1
    %1187 = vsyncpa [#allocation5], 1
    %s1188 = scalar_lea.sflag [#allocation5], 1
    %1189 = vsyncpa %s1188, 1

</llo_original>
